<compile_context>
chip_gen: v7x
topology: tpu7x:2x2x1
jax: 0.10.0
libtpu: 0.0.40
codegen_flags: <defaults>
</compile_context>

<pallas_src>
import functools
import math

import jax
import jax.numpy as jnp
from jax import lax
from jax.experimental import pallas as pl
from jax.experimental.pallas import tpu as pltpu


def make_sinusoidal_pe(length, dimension, scale=1.0):
    """Sinusoidal table matching the PyTorch constructor (sinusoidal=True)."""
    position = jnp.arange(length, dtype=jnp.float32)[:, None]                    # (L, 1)
    div_term = jnp.exp(jnp.arange(0, dimension, 2, dtype=jnp.float32)
                       * (-math.log(10000.0) / dimension))                       # (D/2,)
    pe = jnp.zeros((length, dimension), jnp.float32)
    pe = pe.at[:, 0::2].set(jnp.sin(position * div_term))
    pe = pe.at[:, 1::2].set(jnp.cos(position * div_term))
    return pe * scale
    # (sinusoidal=False just means pe is a learned (L, D) parameter; the kernels
    #  below take the table as a plain array either way.)


# ---------------------------------------------------------------------------
# VMEM budgeting (generation-aware: v5e/v6e 128 MiB, v7x 64 MiB physical).
# ---------------------------------------------------------------------------
def _vmem_capacity_bytes():
    try:
        cap = int(pltpu.get_tpu_info().vmem_capacity_bytes)
    except Exception:
        cap = 64 * 1024 * 1024          # v7x-sized (smallest) fallback
    return max(cap, 16 * 1024 * 1024)


def _vmem_limits():
    """(scoped vmem limit to request, byte budget to tile blocks against)."""
    cap = _vmem_capacity_bytes()
    return int(cap * 0.75), int(cap * 0.5)


def _derive_row_tile(num_rows, live_bytes_per_row, budget_bytes,
                     sublane=8, min_steps=4):
    """Largest leading-dim tile under the VMEM budget, multiple of 8, capped so
    big problems get >= min_steps grid steps (DMA/compute overlap + both v7x
    TensorCores via the "parallel" grid axis)."""
    ts = max(sublane, budget_bytes // max(1, live_bytes_per_row))
    if num_rows >= min_steps * sublane:
        ts = min(ts, pl.cdiv(num_rows, min_steps))
    ts = min(ts, num_rows)
    if ts < num_rows:                          # partial-range tile: sublane align
        ts = min(num_rows, max(sublane, (ts // sublane) * sublane))
    return ts


# ---------------------------------------------------------------------------
# Default path: out = x + pe[:S] broadcast over the batch axis.
# ---------------------------------------------------------------------------
def _add_pe_flat_kernel(x_ref, pe_ref, o_ref, *, batch, dim):
    # x_ref / o_ref: (TS, batch*dim) lane-dense blocks; pe_ref: (TS, dim).
    # batch < 8 on this path, so the static loop issues at most 7 adds/stores;
    # each slice is lane-contiguous (lane-aligned whenever dim % 128 == 0).
    pe_row = pe_ref[...]
    for b in range(batch):
        sl = slice(b * dim, (b + 1) * dim)
        o_ref[:, sl] = (x_ref[:, sl] + pe_row).astype(o_ref.dtype)


def _add_pe_3d_kernel(x_ref, pe_ref, o_ref):
    # x_ref: (TS, B, D); pe_ref: (TS, 1, D) -> sublane broadcast over batch.
    o_ref[...] = (x_ref[...] + pe_ref[...]).astype(o_ref.dtype)


def _add_positional(x, pe, *, row_tile=None):
    S, B, D = x.shape
    L = pe.shape[0]
    if S > L:
        raise ValueError(f"sequence length {S} exceeds positional table {L}")
    pe_s = pe[:S].astype(x.dtype)       # slice + cast once (halves pe DMA for bf16 x)

    itemsize = jnp.dtype(x.dtype).itemsize
    vmem_limit, budget = _vmem_limits()
    # live VMEM per S-row per grid step: x + out + pe blocks, each double-buffered
    live_per_row = 2 * (2 * B * D + D) * itemsize
    ts = row_tile if row_tile is not None else _derive_row_tile(S, live_per_row, budget)
    ts = max(1, min(int(ts), S))
    grid = (pl.cdiv(S, ts),)

    if B < 8:
        # Small batch: (TS, B, D) blocks would waste most sublanes -> flatten to
        # (S, B*D) so DMAs/stores are dense; broadcast pe over batch in-kernel.
        kernel = functools.partial(_add_pe_flat_kernel, batch=B, dim=D)
        x_in, pe_in = x.reshape(S, B * D), pe_s
        in_specs = [pl.BlockSpec((ts, B * D), lambda i: (i, 0)),
                    pl.BlockSpec((ts, D), lambda i: (i, 0))]
        out_specs = pl.BlockSpec((ts, B * D), lambda i: (i, 0))
        out_shape = jax.ShapeDtypeStruct((S, B * D), x.dtype)
    else:
        kernel = _add_pe_3d_kernel
        x_in, pe_in = x, pe_s.reshape(S, 1, D)
        in_specs = [pl.BlockSpec((ts, B, D), lambda i: (i, 0, 0)),
                    pl.BlockSpec((ts, 1, D), lambda i: (i, 0, 0))]
        out_specs = pl.BlockSpec((ts, B, D), lambda i: (i, 0, 0))
        out_shape = jax.ShapeDtypeStruct((S, B, D), x.dtype)

    out = pl.pallas_call(
        kernel,
        out_shape=out_shape,
        grid=grid,
        in_specs=in_specs,
        out_specs=out_specs,
        input_output_aliases={0: 0},          # out = x + pe: reuse x's HBM buffer
        compiler_params=pltpu.CompilerParams(
            dimension_semantics=("parallel",),
            vmem_limit_bytes=vmem_limit),
    )(x_in, pe_in)
    return out.reshape(S, B, D)


# ---------------------------------------------------------------------------
# Indices path: out[s, b] = x[s, b] + pe[indices[b, s]]
# ---------------------------------------------------------------------------
# One-hot gather does ~2*L*D flops per gathered row (~L/4 flops/byte); above
# roughly L ~ 1000-2500 it leaves the HBM roofline and becomes MXU-bound
# (earliest on v7x), so switch to an in-VMEM row gather beyond this length.
_ONEHOT_MAX_LEN = 1024


def _gather_pe_onehot_kernel(x_ref, idx_ref, pe_ref, o_ref):
    # x_ref/o_ref: (T, D) with T = pos_tile*B flattened rows; idx_ref: (T, 1);
    # pe_ref: (L, D) resident table.  Gather = one-hot (T, L) @ (L, D) on the MXU.
    rows, length = x_ref.shape[0], pe_ref.shape[0]
    onehot = (idx_ref[...] ==
              lax.broadcasted_iota(jnp.int32, (rows, length), 1)).astype(jnp.float32)
    gathered = jnp.dot(onehot, pe_ref[...].astype(jnp.float32),
                       preferred_element_type=jnp.float32)
    o_ref[...] = (x_ref[...].astype(jnp.float32) + gathered).astype(o_ref.dtype)


def _gather_pe_take_kernel(x_ref, idx_ref, pe_ref, o_ref):
    # Large-L variant: gather rows straight out of the VMEM-resident table so
    # the kernel stays memory-bound instead of MXU-bound.
    # TODO(synk): for tables too large for VMEM, page the table from HBM with
    # manual make_async_copy double-buffering instead of keeping it resident.
    length = pe_ref.shape[0]
    idx = jnp.clip(idx_ref[...][:, 0], 0, length - 1)
    rows = jnp.take(pe_ref[...], idx, axis=0).astype(jnp.float32)
    o_ref[...] = (x_ref[...].astype(jnp.float32) + rows).astype(o_ref.dtype)


def _add_positional_gather(x, pe, indices, *, pos_tile=None):
    S, B, D = x.shape
    L = pe.shape[0]
    # torch: pe[indices].transpose(0, 1) with indices (B, S) -> out[s, b] uses
    # pe[indices[b, s]].  Flatten everything to rows ordered (position, batch)
    # so each grid step handles a whole tile of positions with lane-dense blocks.
    idx = jnp.transpose(indices.astype(jnp.int32), (1, 0)).reshape(S * B, 1)
    x_flat = x.reshape(S * B, D)
    pe_f32 = pe.astype(jnp.float32)      # keep table precision through the gather
    # TODO(synk): negative / out-of-range indices silently add 0 on the one-hot
    # path (PyTorch would wrap or raise); add validation if needed.

    itemsize = jnp.dtype(x.dtype).itemsize
    vmem_limit, budget = _vmem_limits()
    # Fixed cost: resident pe table (the pipeline still double-buffers it even
    # though its block index never changes).
    # TODO(synk): single-buffer it (pipeline_mode=pl.Buffered(1)) and/or keep the
    # table in bf16 to halve its footprint on v7x's 64 MiB VMEM for large L.
    fixed = 2 * L * D * 4
    # Per position: x/out/idx blocks double-buffered + one-hot and f32 temporaries.
    per_pos = 2 * (2 * B * D * itemsize + B * 4) + B * L * 4 + 3 * B * D * 4

    if pos_tile is not None:
        ts = int(pos_tile)
    else:
        ts = max(1, (budget - fixed) // max(1, per_pos))
        if S * B > 4 * 256:
            # Enough work: >=4 grid steps (overlap + megacore) while keeping the
            # MXU fed with >=256 rows per step.
            ts = min(ts, max(pl.cdiv(S, 4), pl.cdiv(256, B)))
    ts = max(1, min(ts, S))
    if ts < S:
        # keep the block's sublane dim (ts * B) a multiple of 8
        g = 8 // math.gcd(B, 8)
        ts = min(S, max(g, (ts // g) * g))
    grid = (pl.cdiv(S, ts),)
    rows = ts * B

    kernel = (_gather_pe_onehot_kernel if L <= _ONEHOT_MAX_LEN
              else _gather_pe_take_kernel)

    out = pl.pallas_call(
        kernel,
        out_shape=jax.ShapeDtypeStruct((S * B, D), x.dtype),
        grid=grid,
        in_specs=[
            pl.BlockSpec((rows, D), lambda i: (i, 0)),
            pl.BlockSpec((rows, 1), lambda i: (i, 0)),
            pl.BlockSpec((L, D), lambda i: (0, 0)),    # full table, stays resident
        ],
        out_specs=pl.BlockSpec((rows, D), lambda i: (i, 0)),
        input_output_aliases={0: 0},          # out = x + gathered pe
        compiler_params=pltpu.CompilerParams(
            dimension_semantics=("parallel",),
            vmem_limit_bytes=vmem_limit),
    )(x_flat, idx, pe_f32)
    return out.reshape(S, B, D)


def positional_embedding(x, pe, indices=None, *, row_tile=None, pos_tile=None):
    """Pallas forward of PositionalEmbedding.  x: (S, B, D), pe: (L, D),
    indices: optional (B, S) int array.  row_tile / pos_tile override the
    auto (VMEM-budget-derived) tile sizes, mainly for testing."""
    if indices is None:
        return _add_positional(x, pe, row_tile=row_tile)
    return _add_positional_gather(x, pe, indices, pos_tile=pos_tile)


if __name__ == "__main__":
    key = jax.random.PRNGKey(0)
    k1, k2, k3, k4, k5 = jax.random.split(key, 5)

    # jit so input_output_aliases stays an XLA-internal buffer-reuse hint and the
    # caller's arrays are never donated out from under it.
    fn = jax.jit(positional_embedding, static_argnames=("row_tile", "pos_tile"))

    def check(out, ref, tol):
        assert out.shape == ref.shape and out.dtype == ref.dtype
        err = float(jnp.max(jnp.abs(out - ref)))
        assert err <= tol, f"max abs err {err} > {tol}"

    # 1) default path, small batch -> flattened lane-dense layout, single step.
    S, B, D, L = 8, 2, 32, 16
    x = jax.random.normal(k1, (S, B, D), jnp.float32)
    pe = make_sinusoidal_pe(L, D, scale=1.0)
    ref = x + pe[:S][:, None, :]
    out = jax.block_until_ready(fn(x, pe))
    check(out, ref, 1e-6)

    # 2) default path, multi-step grid with a partial last tile (flat layout).
    S2, B2, D2 = 20, 2, 64
    x2 = jax.random.normal(k2, (S2, B2, D2), jnp.float32)
    pe2 = make_sinusoidal_pe(32, D2, scale=1.0)
    ref2 = x2 + pe2[:S2][:, None, :]
    out2 = jax.block_until_ready(fn(x2, pe2, row_tile=8))
    check(out2, ref2, 1e-6)

    # 3) default path, batch >= 8 -> native (TS, B, D) blocks.
    S3, B3, D3 = 16, 8, 128
    x3 = jax.random.normal(k3, (S3, B3, D3), jnp.float32)
    pe3 = make_sinusoidal_pe(S3, D3, scale=1.0)
    ref3 = x3 + pe3[:S3][:, None, :]
    out3 = jax.block_until_ready(fn(x3, pe3))
    check(out3, ref3, 1e-6)

    # 4) indices path (batched one-hot MXU gather), single step.
    #    Loose tolerance: the MXU may run f32 matmuls as bf16 passes.
    idx = jax.random.randint(k4, (B, S), 0, L, dtype=jnp.int32)
    ref4 = x + jnp.transpose(pe[idx], (1, 0, 2))
    out4 = jax.block_until_ready(fn(x, pe, indices=idx))
    check(out4, ref4, 1e-2)

    # 5) indices path, multi-step grid with a partial last tile.
    S5, B5, D5, L5 = 10, 2, 32, 24
    x5 = jax.random.normal(k5, (S5, B5, D5), jnp.float32)
    pe5 = make_sinusoidal_pe(L5, D5, scale=1.0)
    idx5 = jax.random.randint(k1, (B5, S5), 0, L5, dtype=jnp.int32)
    ref5 = x5 + jnp.transpose(pe5[idx5], (1, 0, 2))
    out5 = jax.block_until_ready(fn(x5, pe5, indices=idx5, pos_tile=4))
    check(out5, ref5, 1e-2)

    print("KERNEL_OK")
</pallas_src>

<mosaic_0001>
module attributes {stable_mosaic.version = 11 : i64} {
  func.func @_add_pe_flat_kernel(%arg0: i32, %arg1: memref<8x64xf32, #tpu.memory_space<vmem>>, %arg2: memref<8x32xf32, #tpu.memory_space<vmem>>, %arg3: memref<8x64xf32, #tpu.memory_space<vmem>>) attributes {dimension_semantics = [#tpu.dimension_semantics<parallel>], iteration_bounds = array<i64: 1>, scalar_prefetch = 0 : i64, scratch_operands = 0 : i64, tpu.core_type = #tpu.core_type<tc>, window_params = [{transform_indices = @transform_0, window_bounds = array<i64: 8, 64>}, {transform_indices = @transform_1, window_bounds = array<i64: 8, 32>}, {transform_indices = @transform_2, window_bounds = array<i64: 8, 64>}]} {
    %c0 = arith.constant 0 : index
    %c0_0 = arith.constant 0 : index
    %0 = vector.load %arg2[%c0, %c0_0] : memref<8x32xf32, #tpu.memory_space<vmem>>, vector<8x32xf32>
    %c0_1 = arith.constant 0 : index
    %c0_2 = arith.constant 0 : index
    %1 = vector.load %arg1[%c0_1, %c0_2] : memref<8x64xf32, #tpu.memory_space<vmem>>, vector<8x32xf32>
    %2 = arith.addf %1, %0 : vector<8x32xf32>
    %c0_3 = arith.constant 0 : index
    %c0_4 = arith.constant 0 : index
    %3 = vector.load %arg3[%c0_3, %c0_4] : memref<8x64xf32, #tpu.memory_space<vmem>>, vector<8x32xf32>
    tpu.vector_store %arg3[%c0_3, %c0_4], %2 {strides = array<i32>} : memref<8x64xf32, #tpu.memory_space<vmem>>, vector<8x32xf32>,
    %c0_5 = arith.constant 0 : index
    %c32 = arith.constant 32 : index
    %4 = vector.load %arg1[%c0_5, %c32] : memref<8x64xf32, #tpu.memory_space<vmem>>, vector<8x32xf32>
    %5 = arith.addf %4, %0 : vector<8x32xf32>
    %c0_6 = arith.constant 0 : index
    %c32_7 = arith.constant 32 : index
    %6 = vector.load %arg3[%c0_6, %c32_7] : memref<8x64xf32, #tpu.memory_space<vmem>>, vector<8x32xf32>
    tpu.vector_store %arg3[%c0_6, %c32_7], %5 {strides = array<i32>} : memref<8x64xf32, #tpu.memory_space<vmem>>, vector<8x32xf32>,
    return
  }
  func.func @transform_0(%arg0: i32) -> (i32, i32) {
    %c0_i32 = arith.constant 0 : i32
    %c0_i32_0 = arith.constant 0 : i32
    return %arg0, %c0_i32 : i32, i32
  }
  func.func @transform_1(%arg0: i32) -> (i32, i32) {
    %c0_i32 = arith.constant 0 : i32
    %c0_i32_0 = arith.constant 0 : i32
    return %arg0, %c0_i32 : i32, i32
  }
  func.func @transform_2(%arg0: i32) -> (i32, i32) {
    %c0_i32 = arith.constant 0 : i32
    %c0_i32_0 = arith.constant 0 : i32
    return %arg0, %c0_i32 : i32, i32
  }
}

</mosaic_0001>

<llo_original>
// kernel: positional_embedding.1
$region0: #{positional_embedding.1}
  #allocation0 [shape = 'u32[]', space=smem, size = 0x4, offset = 0x4, fixed_abs, tag = 'smem constant byte address 0x4 - core index']
  #allocation1 [shape = 'u32[144,128]{1,0:T(1,128)}', space=vmem, size = 0x12000, scoped, tag = 'internal scratch']
  %s0 = inlined_call_operand.vmem [shape: f32[8,64], index: 0, kind: input, shape index: {}, may-alias: {0,2}]
  %s1 = inlined_call_operand.vmem [shape: f32[8,32], index: 1, kind: input, shape index: {}]
  %s2 = inlined_call_operand.vmem [shape: f32[8,64], index: 2, kind: output, shape index: {}, may-alias: {0,2}]
  %s3 = sld [smem:[#allocation0]]
  $region18: #{positional_embedding.1} parent=0
    _
  %s5 = ssub.s32 1, %s3
  %s6 = scalar_select 0, %s5, %s3
  // Predicated region
  $region2: #{positional_embedding.1} parent=0 // pred_check
    _
  $region3: #{positional_embedding.1} parent=0 // pred_check_branch
    %8 = sbr.rel (0) target = $region5
  $region4: #{positional_embedding.1} parent=0 // pred_region
    _
  $region5: #{positional_embedding.1} parent=0 // pred_fallthru
    _
  // Predicated region
  $region6: #{positional_embedding.1} parent=0 // pred_check
    _
  $region7: #{positional_embedding.1} parent=0 // pred_check_branch
    %10 = sbr.rel (0) target = $region9
  $region8: #{positional_embedding.1} parent=0 // pred_region
    _
  $region9: #{positional_embedding.1} parent=0 // pred_fallthru
    _
  %v11 = vld [vmem:[%s1] sm:$0xff]
  %v12 = vld [vmem:[%s0] sm:$0xff]
  %v13 = vadd.f32 %v12, %v11
  %vm14 = vcmask 261120
  %15 = vst.msk [vmem:[%s2] sm:$0xff] %vm14, %v13
  %v16 = vld [vmem:[%s0] sm:$0xff]
  %18 = vrot.lane.b32.xlu0 %v11, 32
  %v19 = vpop.permute.xlu0 %18
  %v21 = vadd.f32 %v16, %v19
  %vm22 = vcmask 523520
  %23 = vst.msk [vmem:[%s2] sm:$0xff] %vm22, %v21
  // Predicated region
  $region10: #{positional_embedding.1} parent=0 // pred_check
    _
  $region11: #{positional_embedding.1} parent=0 // pred_check_branch
    %25 = sbr.rel (0) target = $region13
  $region12: #{positional_embedding.1} parent=0 // pred_region
    _
  $region13: #{positional_embedding.1} parent=0 // pred_fallthru
    _
  // Predicated region
  $region14: #{positional_embedding.1} parent=0 // pred_check
    _
  $region15: #{positional_embedding.1} parent=0 // pred_check_branch
    %27 = sbr.rel (0) target = $region17
  $region16: #{positional_embedding.1} parent=0 // pred_region
    _
  $region17: #{positional_embedding.1} parent=0 // pred_fallthru
    _

</llo_original>
